<compile_context>
chip_gen: v6e
topology: v6e:2x2x1
jax: 0.10.0
libtpu: 0.0.40
codegen_flags: <defaults>
</compile_context>

<pallas_src>
import numpy as np
import jax
import jax.numpy as jnp
from jax.experimental import pallas as pl
from jax.experimental.pallas import tpu as pltpu


LANE = 128
SUBLANE = 8
MAX_TILE_M = 512


def _round_up(x, m):
    return ((x + m - 1) // m) * m


def _next_pow2(n):
    n = int(n)
    return 1 << max(0, (n - 1).bit_length())


# ----------------------------------------------------------------------------
# Resident-weight BlockSpec helper (Buffered(1) with graceful fallback)
# ----------------------------------------------------------------------------
_RESIDENT_MODE = "unprobed"


def _copy_probe_kernel(x_ref, o_ref):
    o_ref[...] = x_ref[...]


def _resident_pipeline_mode():
    """pl.Buffered(1): constant-index (grid-resident) weights don't need double
    buffering; halves their VMEM footprint.  Probe once so the script still
    runs cleanly if this jax build rejects pipeline_mode on pallas_call specs."""
    global _RESIDENT_MODE
    if _RESIDENT_MODE == "unprobed":
        try:
            mode = pl.Buffered(1)
            fn = pl.pallas_call(
                _copy_probe_kernel,
                grid=(1,),
                in_specs=[pl.BlockSpec((SUBLANE, LANE), lambda i: (0, 0),
                                       pipeline_mode=mode)],
                out_specs=pl.BlockSpec((SUBLANE, LANE), lambda i: (0, 0)),
                out_shape=jax.ShapeDtypeStruct((SUBLANE, LANE), jnp.float32),
            )
            jax.block_until_ready(fn(jnp.zeros((SUBLANE, LANE), jnp.float32)))
            _RESIDENT_MODE = mode
        except Exception:
            _RESIDENT_MODE = None
    return _RESIDENT_MODE


def _weight_spec(shape):
    mode = _resident_pipeline_mode()
    if mode is None:
        return pl.BlockSpec(shape, lambda i: (0, 0))
    return pl.BlockSpec(shape, lambda i: (0, 0), pipeline_mode=mode)


# ----------------------------------------------------------------------------
# Pallas kernels: fused 2-layer MLPs (bf16 MXU inputs, f32 accumulate/epilogue)
# ----------------------------------------------------------------------------
def _mlp1_kernel(x_ref, w1_ref, b1_ref, w2_ref, b2_ref, o_ref):
    h = jnp.dot(x_ref[...], w1_ref[...], preferred_element_type=jnp.float32)
    h = jnp.maximum(h + b1_ref[...], 0.0)
    y = (jnp.dot(h.astype(jnp.bfloat16), w2_ref[...],
                 preferred_element_type=jnp.float32) + b2_ref[...])
    o_ref[...] = y.astype(o_ref.dtype)


def _mlp2_kernel(a_ref, b_ref, w1a_ref, w1b_ref, b1_ref, w2_ref, b2_ref, o_ref):
    # The [A | B] feature concat is fused by splitting W1's rows.
    h = (jnp.dot(a_ref[...], w1a_ref[...], preferred_element_type=jnp.float32)
         + jnp.dot(b_ref[...], w1b_ref[...], preferred_element_type=jnp.float32)
         + b1_ref[...])
    h = jnp.maximum(h, 0.0)
    y = (jnp.dot(h.astype(jnp.bfloat16), w2_ref[...],
                 preferred_element_type=jnp.float32) + b2_ref[...])
    o_ref[...] = y.astype(o_ref.dtype)


# ----------------------------------------------------------------------------
# Tiling / cost helpers
# ----------------------------------------------------------------------------
def _choose_rows(m):
    """Row tile & padded row count.  One big tile when the batch is small
    (per-grid-step overhead ~0.35us dwarfs the matmul), otherwise >= 2 grid
    steps (both TCs on v7x via "parallel") with the tile capped at 512."""
    m8 = _round_up(max(int(m), SUBLANE), SUBLANE)
    if m8 < 2 * LANE:
        return m8, m8
    tile = min(MAX_TILE_M, _round_up(pl.cdiv(m8, 2), LANE))
    return tile, _round_up(m8, tile)


def _vmem_limit(tile, k_in, hp, op):
    # single-buffered weights + double-buffered activation/output tiles + slack
    weights = (k_in * hp + hp * op) * 2 + (hp + op) * 4
    acts = 2 * tile * (k_in + op) * 2
    est = int(1.5 * (weights + acts)) + (4 << 20)
    return max(32 << 20, min(64 << 20, est))


def _cost(m, k_in, hp, op):
    flops = 2 * m * k_in * hp + 2 * m * hp * op
    bytes_accessed = (m * k_in + m * op + k_in * hp + hp * op) * 2 + (hp + op) * 4
    return pl.CostEstimate(flops=flops, transcendentals=0,
                           bytes_accessed=bytes_accessed)


def _pad_rows(x, m_pad):
    m = x.shape[0]
    if m_pad == m:
        return x
    return jnp.pad(x, ((0, m_pad - m), (0, 0)))


# ----------------------------------------------------------------------------
# Batched MLP wrappers (outputs stay bf16 & feature-padded; rows may be padded)
# ----------------------------------------------------------------------------
def mlp1_pallas(x, params):
    """x: (M, K) bf16 -> (m_pad, OP) bf16."""
    w1, b1, w2, b2 = params
    M, k = x.shape
    hp, op = w1.shape[1], w2.shape[1]
    tile, m_pad = _choose_rows(M)
    x = _pad_rows(x.astype(jnp.bfloat16), m_pad)
    return pl.pallas_call(
        _mlp1_kernel,
        grid=(m_pad // tile,),
        in_specs=[
            pl.BlockSpec((tile, k), lambda i: (i, 0)),
            _weight_spec((k, hp)),
            _weight_spec((1, hp)),
            _weight_spec((hp, op)),
            _weight_spec((1, op)),
        ],
        out_specs=pl.BlockSpec((tile, op), lambda i: (i, 0)),
        out_shape=jax.ShapeDtypeStruct((m_pad, op), jnp.bfloat16),
        compiler_params=pltpu.CompilerParams(
            dimension_semantics=("parallel",),
            vmem_limit_bytes=_vmem_limit(tile, k, hp, op)),
        cost_estimate=_cost(m_pad, k, hp, op),
    )(x, w1, b1, w2, b2)


def mlp2_pallas(a, b, params):
    """a: (M, KA) bf16, b: (M, KB) bf16 -> (m_pad, OP) bf16."""
    w1a, w1b, b1, w2, b2 = params
    M, ka = a.shape
    kb = b.shape[1]
    hp, op = w1a.shape[1], w2.shape[1]
    tile, m_pad = _choose_rows(M)
    a = _pad_rows(a.astype(jnp.bfloat16), m_pad)
    b = _pad_rows(b.astype(jnp.bfloat16), m_pad)
    return pl.pallas_call(
        _mlp2_kernel,
        grid=(m_pad // tile,),
        in_specs=[
            pl.BlockSpec((tile, ka), lambda i: (i, 0)),
            pl.BlockSpec((tile, kb), lambda i: (i, 0)),
            _weight_spec((ka, hp)),
            _weight_spec((kb, hp)),
            _weight_spec((1, hp)),
            _weight_spec((hp, op)),
            _weight_spec((1, op)),
        ],
        out_specs=pl.BlockSpec((tile, op), lambda i: (i, 0)),
        out_shape=jax.ShapeDtypeStruct((m_pad, op), jnp.bfloat16),
        compiler_params=pltpu.CompilerParams(
            dimension_semantics=("parallel",),
            vmem_limit_bytes=_vmem_limit(tile, ka + kb, hp, op)),
        cost_estimate=_cost(m_pad, ka + kb, hp, op),
    )(a, b, w1a, w1b, b1, w2, b2)


# ----------------------------------------------------------------------------
# Parameters (hidden/output dims padded to 128; padding rows/cols are exact
# zeros, so feeding 128-padded activations through is mathematically exact)
# ----------------------------------------------------------------------------
def _init_mlp(key, in_segments, d_hidden, d_out):
    """in_segments: list of (real_rows, padded_rows) blocks of W1 in input order."""
    total_in = sum(r for r, _ in in_segments)
    hp = _round_up(d_hidden, LANE)
    op = _round_up(d_out, LANE)
    k1, k2, k3, k4 = jax.random.split(key, 4)
    w1 = 0.1 * jax.random.normal(k1, (total_in, d_hidden), jnp.float32)
    b1 = 0.1 * jax.random.normal(k2, (1, d_hidden), jnp.float32)
    w2 = 0.1 * jax.random.normal(k3, (d_hidden, d_out), jnp.float32)
    b2 = 0.1 * jax.random.normal(k4, (1, d_out), jnp.float32)

    blocks, off = [], 0
    for real, padded in in_segments:
        blk = jnp.zeros((padded, hp), jnp.bfloat16)
        blk = blk.at[:real, :d_hidden].set(w1[off:off + real].astype(jnp.bfloat16))
        blocks.append(blk)
        off += real
    b1p = jnp.zeros((1, hp), jnp.float32).at[:, :d_hidden].set(b1)
    w2p = jnp.zeros((hp, op), jnp.bfloat16).at[:d_hidden, :d_out].set(
        w2.astype(jnp.bfloat16))
    b2p = jnp.zeros((1, op), jnp.float32).at[:, :d_out].set(b2)
    return blocks, b1p, w2p, b2p


# ----------------------------------------------------------------------------
# Jitted per-level batched computations (shapes are bucketed -> few retraces)
# ----------------------------------------------------------------------------
@jax.jit
def _base_level(cell_embs, bound_tens, terminal_tens, leaf_ids, params):
    # [bound | terminal] concat is fused into the already-materialized gather.
    x = jnp.concatenate(
        [jnp.transpose(bound_tens[:, leaf_ids], (1, 0, 2)),
         jnp.transpose(terminal_tens[:, leaf_ids], (1, 0, 2))], axis=-1)
    L, B, K = x.shape
    out = mlp1_pallas(x.reshape(L * B, K), params)
    out = out[:L * B].reshape(L, B, -1)
    return cell_embs.at[leaf_ids].set(out)


@jax.jit
def _dp_level(cell_embs, child_tens_all, bound_tens, node_ids, children_ids, params):
    ch = cell_embs[children_ids]                                 # (N, 4, B, dpp)
    N, _, B, dpp = ch.shape
    child_tens = jnp.transpose(ch, (0, 2, 1, 3)).reshape(N, B, 4 * dpp)
    b = jnp.transpose(bound_tens[:, node_ids], (1, 0, 2)).reshape(N * B, -1)
    out = mlp2_pallas(child_tens.reshape(N * B, 4 * dpp), b, params)
    out = out[:N * B].reshape(N, B, -1)
    return (cell_embs.at[node_ids].set(out),
            child_tens_all.at[node_ids].set(child_tens))


@jax.jit
def _top_apply(child_tens_all, cell_embs, cross_ids0, portal_probs, params):
    B = cell_embs.shape[1]
    ncp = cross_ids0.shape[0]
    probs = mlp2_pallas(child_tens_all[0], cell_embs[0], params)
    return portal_probs.at[:, cross_ids0].set(probs[:B, :ncp])


@jax.jit
def _retrieve_level(child_tens_all, portal_probs, null_portal, node_ids,
                    bound_idx, cross_ids, params):
    ct = child_tens_all[node_ids]                                # (N, B, 4*dpp)
    N, B, k4 = ct.shape
    ncp = bound_idx.shape[1]
    # gather bound portal probs (index == n_portals selects the null portal)
    ext = jnp.concatenate([portal_probs, null_portal], axis=1)   # (B, P+1)
    b = jnp.transpose(jnp.take(ext, bound_idx, axis=1), (1, 0, 2)).reshape(N * B, ncp)
    probs = mlp2_pallas(ct.reshape(N * B, k4), b, params)
    probs = probs[:N * B, :ncp].reshape(N, B, ncp)
    flat_vals = jnp.transpose(probs, (1, 0, 2)).reshape(B, N * ncp)
    return portal_probs.at[:, cross_ids].set(flat_vals)


def _bucket_ids(ids):
    """Pad a per-level id list to the next power of 2 by repeating the last id.
    Repeats recompute identical values and the scatters are idempotent, so the
    result is unchanged while the jitted level fns see only a few shapes."""
    n = len(ids)
    bucket = _next_pow2(n)
    if bucket > n:
        ids = np.concatenate([ids, np.full(bucket - n, ids[-1], ids.dtype)])
    return ids


# ----------------------------------------------------------------------------
# NNArora model (host-side quadtree traversal, batched per level on device)
# ----------------------------------------------------------------------------
class NNAroraPallas:
    def __init__(self, model_args, qt_args, key):
        assert model_args["type"] == "mlp"
        m = qt_args["m"]
        kb = qt_args["kb"]
        ncp = (m + 2) * 4                      # n_cell_portal
        emb = model_args["emb_size"]
        dp = emb * ncp                         # dp_size
        h = model_args["hidden_size"]
        dpp = _round_up(dp, LANE)

        self.n_cell_p_conf = ncp
        self.dp_size = dp
        self.dpp = dpp

        _resident_pipeline_mode()              # probe Buffered(1) support once

        k_base, k_dp, k_top, k_ret = jax.random.split(key, 4)

        # base:     in = [bound(ncp) | terminal(2*kb)], out = dp_size
        blocks, b1, w2, b2 = _init_mlp(k_base, [(ncp, ncp), (kb * 2, kb * 2)], h, dp)
        self.p_base = (jnp.concatenate(blocks, axis=0), b1, w2, b2)

        # dp:       in = [4 child embs (dp each, stored 128-padded) | bound(ncp)]
        blocks, b1, w2, b2 = _init_mlp(k_dp, [(dp, dpp)] * 4 + [(ncp, ncp)], h, dp)
        self.p_dp = (jnp.concatenate(blocks[:4], axis=0), blocks[4], b1, w2, b2)

        # top:      in = [root child_tens (4*dp) | root emb (dp)], out = ncp
        blocks, b1, w2, b2 = _init_mlp(k_top, [(dp, dpp)] * 4 + [(dp, dpp)], h, ncp)
        self.p_top = (jnp.concatenate(blocks[:4], axis=0), blocks[4], b1, w2, b2)

        # retrieve: in = [child_tens (4*dp) | bound portal probs (ncp)], out = ncp
        blocks, b1, w2, b2 = _init_mlp(k_ret, [(dp, dpp)] * 4 + [(ncp, ncp)], h, ncp)
        self.p_retrieve = (jnp.concatenate(blocks[:4], axis=0), blocks[4], b1, w2, b2)

    def forward(self, tree_struct, cell2bound, cell2cross, bound_tens,
                terminal_tens, null_portal_tens):
        # The reference uses Python int() control flow over the tree; keep the
        # structure on the host, batch all same-depth NN applications per level.
        ts = np.asarray(tree_struct)
        c2b = np.asarray(cell2bound)
        c2c = np.asarray(cell2cross)
        n_cell = ts.shape[0]
        batch = bound_tens.shape[0]
        dpp = self.dpp

        # bf16 activations end-to-end (feature padding columns are exact zeros)
        bound_tens = jnp.asarray(bound_tens, jnp.bfloat16)
        terminal_tens = jnp.asarray(terminal_tens, jnp.bfloat16)
        null_portal = jnp.asarray(null_portal_tens, jnp.bfloat16)

        # ---- host: BFS from root -> depth of every reachable cell ----------
        depth = {0: 0}
        order = [0]
        qpos = 0
        while qpos < len(order):
            c = order[qpos]
            qpos += 1
            ch = ts[c]
            if not np.all(ch == -1):
                for x in ch:
                    x = int(x)
                    depth[x] = depth[c] + 1
                    order.append(x)
        leaves = [c for c in order if np.all(ts[c] == -1)]
        internal = [c for c in order if not np.all(ts[c] == -1)]
        assert internal, "root must have children (matches reference assert)"
        by_depth = {}
        for c in internal:
            by_depth.setdefault(depth[c], []).append(c)

        cross_all = np.concatenate([c2c[c] for c in internal]).astype(np.int64)
        n_portals = int(cross_all.max()) + 1
        assert sorted(set(int(x) for x in cross_all)) == list(range(n_portals))

        # ---- bottom-up (all leaves in one call; then one call per level) ---
        cell_embs = jnp.zeros((n_cell, batch, dpp), jnp.bfloat16)
        child_tens_all = jnp.zeros((n_cell, batch, 4 * dpp), jnp.bfloat16)

        leaf_ids = _bucket_ids(np.array(leaves, np.int32))
        cell_embs = _base_level(cell_embs, bound_tens, terminal_tens,
                                jnp.asarray(leaf_ids), self.p_base)

        for d in sorted(by_depth, reverse=True):
            ids = _bucket_ids(np.array(by_depth[d], np.int32))
            children = ts[ids].astype(np.int32)
            cell_embs, child_tens_all = _dp_level(
                cell_embs, child_tens_all, bound_tens,
                jnp.asarray(ids), jnp.asarray(children), self.p_dp)

        # ---- top-down -------------------------------------------------------
        portal_probs = jnp.zeros((batch, n_portals), jnp.bfloat16)
        portal_probs = _top_apply(child_tens_all, cell_embs,
                                  jnp.asarray(c2c[0].astype(np.int32)),
                                  portal_probs, self.p_top)

        # A cell's boundary portals are cross portals of strict ancestors, so
        # batching retrieve per depth level (parents strictly before children)
        # preserves the reference's pre-order dependency.
        for d in sorted(k for k in by_depth if k > 0):
            ids = _bucket_ids(np.array(by_depth[d], np.int32))
            bound_idx = np.where(c2b[ids] == -1, n_portals, c2b[ids]).astype(np.int32)
            cross_ids = c2c[ids].astype(np.int32).reshape(-1)
            portal_probs = _retrieve_level(
                child_tens_all, portal_probs, null_portal,
                jnp.asarray(ids), jnp.asarray(bound_idx),
                jnp.asarray(cross_ids), self.p_retrieve)

        # ret = cat(portal_probs[0..P-1], dim=1) == the dense array itself
        return portal_probs.astype(jnp.float32)


# ----------------------------------------------------------------------------
# Example run
# ----------------------------------------------------------------------------
if __name__ == "__main__":
    model_args = dict(type="mlp", hidden_size=32, dropout=0.0, emb_size=2)
    qt_args = dict(m=2, kb=4)          # n_cell_portal = 16, dp_size = 32
    batch = 2
    n_cell_p = (qt_args["m"] + 2) * 4  # 16
    kb2 = qt_args["kb"] * 2            # 8

    # Quadtree with 9 cells: root 0 -> children 1,2,3,4; cell 1 -> 5,6,7,8;
    # cells 2..8 are leaves.
    n_cell = 9
    tree_struct = np.full((n_cell, 4), -1, dtype=np.int32)
    tree_struct[0] = [1, 2, 3, 4]
    tree_struct[1] = [5, 6, 7, 8]

    # Root's cross portals get ids 0..15, cell 1's cross portals get 16..31.
    cell2cross = np.zeros((n_cell, n_cell_p), dtype=np.int32)
    cell2cross[0] = np.arange(0, 16)
    cell2cross[1] = np.arange(16, 32)

    # Cell 1's boundary portals reference root portals (written before
    # cell 1's retrieve runs) or -1 (null portal).
    cell2bound = np.full((n_cell, n_cell_p), -1, dtype=np.int32)
    cell2bound[1] = np.array([0, 1, 2, 3, -1, -1, 5, 6, 7, 8, 9, -1, 10, 11, 12, 13],
                             dtype=np.int32)

    key = jax.random.PRNGKey(0)
    k_param, k_bound, k_term, k_null = jax.random.split(key, 4)

    bound_tens = jax.random.normal(k_bound, (batch, n_cell, n_cell_p), jnp.float32)
    terminal_tens = jax.random.normal(k_term, (batch, n_cell, kb2), jnp.float32)
    null_portal_tens = jax.random.normal(k_null, (batch, 1), jnp.float32)

    model = NNAroraPallas(model_args, qt_args, k_param)
    out = model.forward(tree_struct, cell2bound, cell2cross,
                        bound_tens, terminal_tens, null_portal_tens)
    out = jax.block_until_ready(out)

    assert out.shape == (batch, 32), out.shape
    assert out.dtype == jnp.float32
    assert bool(jnp.all(jnp.isfinite(out)))
    print("KERNEL_OK")
</pallas_src>

<mosaic_0001>
module attributes {stable_mosaic.version = 11 : i64} {
  func.func @_copy_probe_kernel(%arg0: i32, %arg1: memref<8x128xf32, #tpu.memory_space<vmem>>, %arg2: memref<8x128xf32, #tpu.memory_space<vmem>>) attributes {dimension_semantics = [#tpu.dimension_semantics<arbitrary>], iteration_bounds = array<i64: 1>, scalar_prefetch = 0 : i64, scratch_operands = 0 : i64, tpu.core_type = #tpu.core_type<tc>, window_params = [{pipeline_mode = #tpu.pipeline_mode<synchronous>, transform_indices = @transform_0, window_bounds = array<i64: 8, 128>}, {pipeline_mode = #tpu.pipeline_mode<synchronous>, transform_indices = @transform_1, window_bounds = array<i64: 8, 128>}]} {
    %c0 = arith.constant 0 : index
    %c0_0 = arith.constant 0 : index
    %0 = vector.load %arg1[%c0, %c0_0] : memref<8x128xf32, #tpu.memory_space<vmem>>, vector<8x128xf32>
    %c0_1 = arith.constant 0 : index
    %c0_2 = arith.constant 0 : index
    %1 = vector.load %arg2[%c0_1, %c0_2] : memref<8x128xf32, #tpu.memory_space<vmem>>, vector<8x128xf32>
    tpu.vector_store %arg2[%c0_1, %c0_2], %0 {strides = array<i32>} : memref<8x128xf32, #tpu.memory_space<vmem>>, vector<8x128xf32>,
    return
  }
  func.func @transform_0(%arg0: i32) -> (i32, i32) {
    %c0_i32 = arith.constant 0 : i32
    %c0_i32_0 = arith.constant 0 : i32
    %c0_i32_1 = arith.constant 0 : i32
    return %c0_i32, %c0_i32_0 : i32, i32
  }
  func.func @transform_1(%arg0: i32) -> (i32, i32) {
    %c0_i32 = arith.constant 0 : i32
    %c0_i32_0 = arith.constant 0 : i32
    %c0_i32_1 = arith.constant 0 : i32
    return %c0_i32, %c0_i32_0 : i32, i32
  }
}

module attributes {stable_mosaic.version = 11 : i64} {
  func.func @_mlp1_kernel(%arg0: i32, %arg1: memref<16x24xbf16, #tpu.memory_space<vmem>>, %arg2: memref<24x128xbf16, #tpu.memory_space<vmem>>, %arg3: memref<1x128xf32, #tpu.memory_space<vmem>>, %arg4: memref<128x128xbf16, #tpu.memory_space<vmem>>, %arg5: memref<1x128xf32, #tpu.memory_space<vmem>>, %arg6: memref<16x128xbf16, #tpu.memory_space<vmem>>) attributes {dimension_semantics = [#tpu.dimension_semantics<parallel>], iteration_bounds = array<i64: 1>, scalar_prefetch = 0 : i64, scratch_operands = 0 : i64, tpu.core_type = #tpu.core_type<tc>, window_params = [{transform_indices = @transform_0, window_bounds = array<i64: 16, 24>}, {pipeline_mode = #tpu.pipeline_mode<synchronous>, transform_indices = @transform_1, window_bounds = array<i64: 24, 128>}, {pipeline_mode = #tpu.pipeline_mode<synchronous>, transform_indices = @transform_2, window_bounds = array<i64: 1, 128>}, {pipeline_mode = #tpu.pipeline_mode<synchronous>, transform_indices = @transform_3, window_bounds = array<i64: 128, 128>}, {pipeline_mode = #tpu.pipeline_mode<synchronous>, transform_indices = @transform_4, window_bounds = array<i64: 1, 128>}, {transform_indices = @transform_5, window_bounds = array<i64: 16, 128>}]} {
    %c0 = arith.constant 0 : index
    %c0_0 = arith.constant 0 : index
    %0 = vector.load %arg1[%c0, %c0_0] : memref<16x24xbf16, #tpu.memory_space<vmem>>, vector<16x24xbf16>
    %c0_1 = arith.constant 0 : index
    %c0_2 = arith.constant 0 : index
    %1 = vector.load %arg2[%c0_1, %c0_2] : memref<24x128xbf16, #tpu.memory_space<vmem>>, vector<24x128xbf16>
    %cst = arith.constant dense<0.000000e+00> : vector<16x128xf32>
    %2 = tpu.matmul %0, %1, %cst {dimension_numbers = #tpu.dot_dimension_numbers<[1], [0], [0], [1], [0, 0, 1, 1], [], []>} : vector<16x24xbf16>, vector<24x128xbf16>, vector<16x128xf32> -> vector<16x128xf32>
    %c0_3 = arith.constant 0 : index
    %c0_4 = arith.constant 0 : index
    %3 = vector.load %arg3[%c0_3, %c0_4] : memref<1x128xf32, #tpu.memory_space<vmem>>, vector<1x128xf32>
    %4 = vector.broadcast %3 : vector<1x128xf32> to vector<16x128xf32>
    %5 = arith.addf %2, %4 : vector<16x128xf32>
    %cst_5 = arith.constant 0.000000e+00 : f32
    %6 = vector.broadcast %cst_5 : f32 to vector<16x128xf32>
    %7 = arith.maximumf %5, %6 : vector<16x128xf32>
    %8 = arith.truncf %7 : vector<16x128xf32> to vector<16x128xbf16>
    %c0_6 = arith.constant 0 : index
    %c0_7 = arith.constant 0 : index
    %9 = vector.load %arg4[%c0_6, %c0_7] : memref<128x128xbf16, #tpu.memory_space<vmem>>, vector<128x128xbf16>
    %cst_8 = arith.constant dense<0.000000e+00> : vector<16x128xf32>
    %10 = tpu.matmul %8, %9, %cst_8 {dimension_numbers = #tpu.dot_dimension_numbers<[1], [0], [0], [1], [0, 0, 1, 1], [], []>} : vector<16x128xbf16>, vector<128x128xbf16>, vector<16x128xf32> -> vector<16x128xf32>
    %c0_9 = arith.constant 0 : index
    %c0_10 = arith.constant 0 : index
    %11 = vector.load %arg5[%c0_9, %c0_10] : memref<1x128xf32, #tpu.memory_space<vmem>>, vector<1x128xf32>
    %12 = vector.broadcast %11 : vector<1x128xf32> to vector<16x128xf32>
    %13 = arith.addf %10, %12 : vector<16x128xf32>
    %14 = arith.truncf %13 : vector<16x128xf32> to vector<16x128xbf16>
    %c0_11 = arith.constant 0 : index
    %c0_12 = arith.constant 0 : index
    %15 = vector.load %arg6[%c0_11, %c0_12] : memref<16x128xbf16, #tpu.memory_space<vmem>>, vector<16x128xbf16>
    tpu.vector_store %arg6[%c0_11, %c0_12], %14 {strides = array<i32>} : memref<16x128xbf16, #tpu.memory_space<vmem>>, vector<16x128xbf16>,
    return
  }
  func.func @transform_0(%arg0: i32) -> (i32, i32) {
    %c0_i32 = arith.constant 0 : i32
    %c0_i32_0 = arith.constant 0 : i32
    return %arg0, %c0_i32 : i32, i32
  }
  func.func @transform_1(%arg0: i32) -> (i32, i32) {
    %c0_i32 = arith.constant 0 : i32
    %c0_i32_0 = arith.constant 0 : i32
    %c0_i32_1 = arith.constant 0 : i32
    return %c0_i32, %c0_i32_0 : i32, i32
  }
  func.func @transform_2(%arg0: i32) -> (i32, i32) {
    %c0_i32 = arith.constant 0 : i32
    %c0_i32_0 = arith.constant 0 : i32
    %c0_i32_1 = arith.constant 0 : i32
    return %c0_i32, %c0_i32_0 : i32, i32
  }
  func.func @transform_3(%arg0: i32) -> (i32, i32) {
    %c0_i32 = arith.constant 0 : i32
    %c0_i32_0 = arith.constant 0 : i32
    %c0_i32_1 = arith.constant 0 : i32
    return %c0_i32, %c0_i32_0 : i32, i32
  }
  func.func @transform_4(%arg0: i32) -> (i32, i32) {
    %c0_i32 = arith.constant 0 : i32
    %c0_i32_0 = arith.constant 0 : i32
    %c0_i32_1 = arith.constant 0 : i32
    return %c0_i32, %c0_i32_0 : i32, i32
  }
  func.func @transform_5(%arg0: i32) -> (i32, i32) {
    %c0_i32 = arith.constant 0 : i32
    %c0_i32_0 = arith.constant 0 : i32
    return %arg0, %c0_i32 : i32, i32
  }
}

</mosaic_0001>

<llo_original>
// kernel: tpu_custom_call.1
$region0: #{tpu_custom_call.1}
  #allocation0 [shape = 'u32[]', space=smem, size = 0x4, offset = 0x4, fixed_abs, tag = 'smem constant byte address 0x4 - core index']
  #allocation1 [shape = 'u32[144,128]{1,0:T(1,128)}', space=vmem, size = 0x12000, scoped, tag = 'internal scratch']
  %s0 = inlined_call_operand.hbm [shape: f32[8,128], index: 0, kind: input, shape index: {}]
  %s1 = inlined_call_operand.hbm [shape: f32[8,128], index: 1, kind: output, shape index: {}]
  %s2 = sld [smem:[#allocation0]]
  $region18: #{tpu_custom_call.1} parent=0
    _
  %s4 = ssub.s32 1, %s2
  %s5 = scalar_select 0, %s4, %s2
  $region1: #{tpu_custom_call.1} parent=0
    #allocation2 [shape = 'u8[4096]{0}', space=vmem, size = 0x1000, scoped, tag = 'input window, operand 0, single buffered']
    #allocation3 [shape = 's32[1]{0}', space=sflag, size = 0x4, scoped, tag = 'scoped memory for tpu_custom_call.1']
    #allocation4 [shape = 's32[1]{0}', space=sflag, size = 0x4, scoped, tag = 'scoped memory for tpu_custom_call.1']
    #allocation5 [shape = 'u8[4096]{0}', space=vmem, size = 0x1000, scoped, tag = 'output window, operand 0, single buffered']
    %6 = vsyncpa [#allocation3], 0
    %7 = vsyncpa [#allocation4], 0
    // Predicated region
    $region2: #{tpu_custom_call.1} parent=1 // pred_check
      _
    $region3: #{tpu_custom_call.1} parent=1 // pred_check_branch
      %9 = sbr.rel (0) target = $region5
    $region4: #{tpu_custom_call.1} parent=1 // pred_region
      %s11 = ssub.s32 128, 128
      %12 = vsyncadd [#allocation3], %s11
      %s14 = sshll.u32 [#allocation2], 4
      %s15 = int_to_ptr.vmem [resolvable:$true] %s14
      %17 = dma.hbm_to_vmem [thread:$0]  %s0, 128, %s15, [#allocation3]
    $region5: #{tpu_custom_call.1} parent=1 // pred_fallthru
      _
    // Predicated region
    $region6: #{tpu_custom_call.1} parent=1 // pred_check
      _
    $region7: #{tpu_custom_call.1} parent=1 // pred_check_branch
      %19 = sbr.rel (0) target = $region9
    $region8: #{tpu_custom_call.1} parent=1 // pred_region
      %20 = dma.done [#allocation3], 128
    $region9: #{tpu_custom_call.1} parent=1 // pred_fallthru
      _
    %v21 = vld [vmem:[#allocation2] sm:$0xff]
    %22 = vst [vmem:[#allocation5] sm:$0xff] %v21
    // Predicated region
    $region10: #{tpu_custom_call.1} parent=1 // pred_check
      _
    $region11: #{tpu_custom_call.1} parent=1 // pred_check_branch
      %24 = sbr.rel (0) target = $region13
    $region12: #{tpu_custom_call.1} parent=1 // pred_region
      %s26 = ssub.s32 128, 128
      %27 = vsyncadd [#allocation4], %s26
      %s29 = sshll.u32 [#allocation5], 4
      %s30 = int_to_ptr.vmem [resolvable:$true] %s29
      %32 = dma.vmem_to_hbm [thread:$0]  %s30, 128, %s1, [#allocation4]
    $region13: #{tpu_custom_call.1} parent=1 // pred_fallthru
      _
    // Predicated region
    $region14: #{tpu_custom_call.1} parent=1 // pred_check
      _
    $region15: #{tpu_custom_call.1} parent=1 // pred_check_branch
      %34 = sbr.rel (0) target = $region17
    $region16: #{tpu_custom_call.1} parent=1 // pred_region
      %35 = dma.done [#allocation4], 128
    $region17: #{tpu_custom_call.1} parent=1 // pred_fallthru
      _
    %36 = vsyncpa [#allocation3], 1
    %37 = vsyncpa [#allocation4], 1

// kernel: _base_level.1
$region0: #{_base_level.1}
  #allocation0 [shape = 'u32[]', space=smem, size = 0x4, offset = 0x4, fixed_abs, tag = 'smem constant byte address 0x4 - core index']
  #allocation1 [shape = 'u32[144,128]{1,0:T(1,128)}', space=vmem, size = 0x12000, scoped, tag = 'internal scratch']
  %s0 = inlined_call_operand.vmem [shape: bf16[16,24], index: 0, kind: input, shape index: {}]
  %s1 = inlined_call_operand.vmem [shape: bf16[24,128], index: 1, kind: input, shape index: {}]
  %s2 = inlined_call_operand.vmem [shape: f32[1,128], index: 2, kind: input, shape index: {}]
  %s3 = inlined_call_operand.vmem [shape: bf16[128,128], index: 3, kind: input, shape index: {}]
  %s4 = inlined_call_operand.vmem [shape: f32[1,128], index: 4, kind: input, shape index: {}]
  %s5 = inlined_call_operand.vmem [shape: bf16[16,128], index: 5, kind: output, shape index: {}]
  %s6 = sld [smem:[#allocation0]]
  $region30: #{_base_level.1} parent=0
    _
  %s8 = ssub.s32 1, %s6
  %s9 = scalar_select 0, %s8, %s6
  // Predicated region
  $region2: #{_base_level.1} parent=0 // pred_check
    _
  $region3: #{_base_level.1} parent=0 // pred_check_branch
    %11 = sbr.rel (0) target = $region5
  $region4: #{_base_level.1} parent=0 // pred_region
    _
  $region5: #{_base_level.1} parent=0 // pred_fallthru
    _
  // Predicated region
  $region6: #{_base_level.1} parent=0 // pred_check
    _
  $region7: #{_base_level.1} parent=0 // pred_check_branch
    %13 = sbr.rel (0) target = $region9
  $region8: #{_base_level.1} parent=0 // pred_region
    _
  $region9: #{_base_level.1} parent=0 // pred_fallthru
    _
  // Predicated region
  $region10: #{_base_level.1} parent=0 // pred_check
    _
  $region11: #{_base_level.1} parent=0 // pred_check_branch
    %15 = sbr.rel (0) target = $region13
  $region12: #{_base_level.1} parent=0 // pred_region
    _
  $region13: #{_base_level.1} parent=0 // pred_fallthru
    _
  // Predicated region
  $region14: #{_base_level.1} parent=0 // pred_check
    _
  $region15: #{_base_level.1} parent=0 // pred_check_branch
    %17 = sbr.rel (0) target = $region17
  $region16: #{_base_level.1} parent=0 // pred_region
    _
  $region17: #{_base_level.1} parent=0 // pred_fallthru
    _
  // Predicated region
  $region18: #{_base_level.1} parent=0 // pred_check
    _
  $region19: #{_base_level.1} parent=0 // pred_check_branch
    %19 = sbr.rel (0) target = $region21
  $region20: #{_base_level.1} parent=0 // pred_region
    _
  $region21: #{_base_level.1} parent=0 // pred_fallthru
    _
  %v21 = vld [vmem:[%s0] sm:$0xf]
  %v22 = vld [vmem:[%s0 + $0x4] sm:$0xf]
  %v23 = vld [vmem:[%s1] sm:$0xf]
  %v24 = vld [vmem:[%s1 + $0x4] sm:$0xf]
  %v25 = vld [vmem:[%s1 + $0x8] sm:$0xf]
  %v26 = vld [vmem:[%s2] sm:$0x1]
  %v28 = vlaneseq
  %v29 = vshrl.u32 %v28, 7
  %v30 = vsub.s32 0, %v29
  %v31 = vrot.slane %v26, %v30
  %v35 = vunpack.c.l.b16 %v21
  %v36 = vunpack.c.l.b16 %v22
  %v37 = vpack.c.b16 %v36, %v35
  %v41 = vunpack.c.l.b16 %v23
  %v42 = vunpack.c.l.b16 %v24
  %v43 = vunpack.c.l.b16 %v25
  %v44 = vpack.c.b16 %v42, %v41
  %v45 = vpack.c.b16 %v43, %v43
  %vm47 = vcmask 195584
  %v49 = vsel %vm47, %v37, 0
  %vm51 = vcmask 1043456
  %v53 = vsel %vm51, %v45, 0
  %55 = vmatprep.subr.bf16.mxu0 0
  %56 = vmatpush1.bf16.msra.mxu0 0
  %57 = vmatprep.subr.bf16.mxu0 0
  %58 = vmatpush1.bf16.msra.mxu0 0
  %59 = vmatprep.subr.bf16.mxu0 0
  %60 = vmatpush1.bf16.msra.mxu0 0
  %61 = vmatprep.subr.bf16.mxu0 0
  %62 = vmatpush1.bf16.msra.mxu0 0
  %63 = vmatprep.subr.bf16.mxu0 0
  %64 = vmatpush1.bf16.msra.mxu0 0
  %65 = vmatprep.subr.bf16.mxu0 0
  %66 = vmatpush1.bf16.msra.mxu0 0
  %67 = vmatprep.subr.bf16.mxu0 0
  %68 = vmatpush1.bf16.msra.mxu0 %v53
  %69 = vmatprep.subr.bf16.mxu0 0
  %70 = vmatpush1.bf16.msra.mxu0 %v44
  %71 = vmatprep.subr.bf16.mxu0 0
  %72 = vmatpush2.bf16.msra.mxu0 0
  %73 = vmatprep.subr.bf16.mxu0 0
  %74 = vmatpush2.bf16.msra.mxu0 0
  %75 = vmatprep.subr.bf16.mxu0 0
  %76 = vmatpush2.bf16.msra.mxu0 0
  %77 = vmatprep.subr.bf16.mxu0 0
  %78 = vmatpush2.bf16.msra.mxu0 0
  %79 = vmatprep.subr.bf16.mxu0 0
  %80 = vmatpush2.bf16.msra.mxu0 0
  %81 = vmatprep.subr.bf16.mxu0 0
  %82 = vmatpush2.bf16.msra.mxu0 0
  %83 = vmatprep.subr.bf16.mxu0 0
  %84 = vmatpush2.bf16.msra.mxu0 0
  %85 = vmatprep.subr.bf16.mxu0 0
  %86 = vmatpush2.bf16.msra.mxu0 0
  %87 = vmatprep.mubr.bf16.mxu0 0
  %88 = vmatmul.mubr.bf16.gmra.mxu0 %v49
  %v89 = vpop.f32.mrf.mxu0
  %v90 = vadd.f32 %v31, %v89
  %v91 = vpop.f32.mrf.mxu0
  %v92 = vpop.f32.mrf.mxu0
  %v93 = vadd.f32 %v31, %v92
  %v94 = vpop.f32.mrf.mxu0
  %95 = vdwg.mxu0
  %v96 = vmax.f32 %v90, 0.0
  %v97 = vmax.f32 %v93, 0.0
  %v98 = vpack.c.bf16 %v97, %v96
  %v99 = vld [vmem:[%s3] sm:$0xf]
  %v100 = vld [vmem:[%s3 + $0x4] sm:$0xf]
  %v101 = vld [vmem:[%s3 + $0x8] sm:$0xf]
  %v102 = vld [vmem:[%s3 + $0xc] sm:$0xf]
  %v103 = vld [vmem:[%s3 + $0x10] sm:$0xf]
  %v104 = vld [vmem:[%s3 + $0x14] sm:$0xf]
  %v105 = vld [vmem:[%s3 + $0x18] sm:$0xf]
  %v106 = vld [vmem:[%s3 + $0x1c] sm:$0xf]
  %v107 = vld [vmem:[%s3 + $0x20] sm:$0xf]
  %v108 = vld [vmem:[%s3 + $0x24] sm:$0xf]
  %v109 = vld [vmem:[%s3 + $0x28] sm:$0xf]
  %v110 = vld [vmem:[%s3 + $0x2c] sm:$0xf]
  %v111 = vld [vmem:[%s3 + $0x30] sm:$0xf]
  %v112 = vld [vmem:[%s3 + $0x34] sm:$0xf]
  %v113 = vld [vmem:[%s3 + $0x38] sm:$0xf]
  %v114 = vld [vmem:[%s3 + $0x3c] sm:$0xf]
  %v115 = vld [vmem:[%s4] sm:$0x1]
  %v117 = vlaneseq
  %v118 = vshrl.u32 %v117, 7
  %v119 = vsub.s32 0, %v118
  %v120 = vrot.slane %v115, %v119
  %v138 = vunpack.c.l.b16 %v99
  %v139 = vunpack.c.l.b16 %v100
  %v140 = vunpack.c.l.b16 %v101
  %v141 = vunpack.c.l.b16 %v102
  %v142 = vunpack.c.l.b16 %v103
  %v143 = vunpack.c.l.b16 %v104
  %v144 = vunpack.c.l.b16 %v105
  %v145 = vunpack.c.l.b16 %v106
  %v146 = vunpack.c.l.b16 %v107
  %v147 = vunpack.c.l.b16 %v108
  %v148 = vunpack.c.l.b16 %v109
  %v149 = vunpack.c.l.b16 %v110
  %v150 = vunpack.c.l.b16 %v111
  %v151 = vunpack.c.l.b16 %v112
  %v152 = vunpack.c.l.b16 %v113
  %v153 = vunpack.c.l.b16 %v114
  %v154 = vpack.c.b16 %v139, %v138
  %v155 = vpack.c.b16 %v141, %v140
  %v156 = vpack.c.b16 %v143, %v142
  %v157 = vpack.c.b16 %v145, %v144
  %v158 = vpack.c.b16 %v147, %v146
  %v159 = vpack.c.b16 %v149, %v148
  %v160 = vpack.c.b16 %v151, %v150
  %v161 = vpack.c.b16 %v153, %v152
  %170 = vmatprep.subr.bf16.mxu0 0
  %171 = vmatpush1.bf16.msra.mxu0 %v161
  %172 = vmatprep.subr.bf16.mxu0 0
  %173 = vmatpush1.bf16.msra.mxu0 %v160
  %174 = vmatprep.subr.bf16.mxu0 0
  %175 = vmatpush1.bf16.msra.mxu0 %v159
  %176 = vmatprep.subr.bf16.mxu0 0
  %177 = vmatpush1.bf16.msra.mxu0 %v158
  %178 = vmatprep.subr.bf16.mxu0 0
  %179 = vmatpush1.bf16.msra.mxu0 %v157
  %180 = vmatprep.subr.bf16.mxu0 0
  %181 = vmatpush1.bf16.msra.mxu0 %v156
  %182 = vmatprep.subr.bf16.mxu0 0
  %183 = vmatpush1.bf16.msra.mxu0 %v155
  %184 = vmatprep.subr.bf16.mxu0 0
  %185 = vmatpush1.bf16.msra.mxu0 %v154
  %186 = vmatprep.subr.bf16.mxu0 0
  %187 = vmatpush2.bf16.msra.mxu0 0
  %188 = vmatprep.subr.bf16.mxu0 0
  %189 = vmatpush2.bf16.msra.mxu0 0
  %190 = vmatprep.subr.bf16.mxu0 0
  %191 = vmatpush2.bf16.msra.mxu0 0
  %192 = vmatprep.subr.bf16.mxu0 0
  %193 = vmatpush2.bf16.msra.mxu0 0
  %194 = vmatprep.subr.bf16.mxu0 0
  %195 = vmatpush2.bf16.msra.mxu0 0
  %196 = vmatprep.subr.bf16.mxu0 0
  %197 = vmatpush2.bf16.msra.mxu0 0
  %198 = vmatprep.subr.bf16.mxu0 0
  %199 = vmatpush2.bf16.msra.mxu0 0
  %200 = vmatprep.subr.bf16.mxu0 0
  %201 = vmatpush2.bf16.msra.mxu0 0
  %202 = vmatprep.mubr.bf16.mxu0 0
  %203 = vmatmul.mubr.bf16.gmra.mxu0 %v98
  %v204 = vpop.f32.mrf.mxu0
  %v205 = vadd.f32 %v120, %v204
  %v206 = vpop.f32.mrf.mxu0
  %v207 = vpop.f32.mrf.mxu0
  %v208 = vadd.f32 %v120, %v207
  %v209 = vpop.f32.mrf.mxu0
  %210 = vdwg.mxu0
  %v211 = vpack.c.bf16 %v208, %v205
  %v213 = vunpack.c.l.b16 %v211
  %v214 = vunpack.c.h.b16 %v211
  %v215 = vpack.c.b16 %v213, %v213
  %v216 = vpack.c.b16 %v214, %v214
  %219 = vst [vmem:[%s5] sm:$0xf] %v215
  %220 = vst [vmem:[%s5 + $0x4] sm:$0xf] %v216
  // Predicated region
  $region22: #{_base_level.1} parent=0 // pred_check
    _
  $region23: #{_base_level.1} parent=0 // pred_check_branch
    %222 = sbr.rel (0) target = $region25
  $region24: #{_base_level.1} parent=0 // pred_region
    _
  $region25: #{_base_level.1} parent=0 // pred_fallthru
    _
  // Predicated region
  $region26: #{_base_level.1} parent=0 // pred_check
    _
  $region27: #{_base_level.1} parent=0 // pred_check_branch
    %224 = sbr.rel (0) target = $region29
  $region28: #{_base_level.1} parent=0 // pred_region
    _
  $region29: #{_base_level.1} parent=0 // pred_fallthru
    _

</llo_original>
